<compile_context>
chip_gen: v7x
topology: tpu7x:2x2x1
jax: 0.10.0
libtpu: 0.0.40
codegen_flags: <defaults>
</compile_context>

<pallas_src>
import functools

import numpy as np
import jax
import jax.numpy as jnp
from jax.experimental import pallas as pl
from jax.experimental.pallas import tpu as pltpu


def attention_kernel(x_ct_ref, x_tc_ref, t0_ref, wv_ref, we_ref,
                     g_ref, attn_ref, *, bb):
    """One grid step = `bb` batches (static unroll).

    x_ct_ref : (bb, C, T)  f32   enc_output, channel-major (free reshape of NCHW)
    x_tc_ref : (bb, T, C)  bf16  enc_output, token-major (for attn @ x)
    t0_ref   : (C, T)      f32   (W0 @ Emb + b0 + bv)^T  -- batch-invariant, precomputed
    wv_ref   : (C, C)      bf16  Wv
    we_ref   : (Lp, C)     bf16  We zero-padded to Lp rows
    g_ref    : (bb, Lp, C) f32
    attn_ref : (bb, Lp, T) f32
    """
    t0 = t0_ref[...]          # (C, T) f32
    wv = wv_ref[...]          # (C, C) bf16
    we = we_ref[...]          # (Lp, C) bf16

    for bi in range(bb):      # static Python unroll; bb is small
        x_ct = x_ct_ref[bi].astype(jnp.bfloat16)                         # (C, T)

        # v^T = Wv @ x^T : NN matmul with N = T = 256 -> fills the 256-wide MXU.
        v_ct = jnp.dot(wv, x_ct, preferred_element_type=jnp.float32)     # (C, T) f32

        # t^T = tanh(t0^T + v^T)   (t0 already contains b0 and bv)
        t_ct = jnp.tanh(t0 + v_ct).astype(jnp.bfloat16)                  # (C, T)

        # logits = We_pad @ t^T : plain NN matmul (no hidden XLU transpose of t).
        # `be` omitted: constant along the softmax axis -> no effect on outputs.
        logits = jnp.dot(we, t_ct, preferred_element_type=jnp.float32)   # (Lp, T) f32

        # softmax over T (f32 math; divide via EUP reciprocal)
        m = jnp.max(logits, axis=-1, keepdims=True)
        e = jnp.exp(logits - m)
        attn = e * pl.reciprocal(jnp.sum(e, axis=-1, keepdims=True), approx=True)
        attn_ref[bi] = attn                                              # (Lp, T)

        # g = attn @ x : x fed in (T, C) layout so this is also a clean NN matmul.
        g_ref[bi] = jnp.dot(attn.astype(jnp.bfloat16), x_tc_ref[bi],
                            preferred_element_type=jnp.float32)          # (Lp, C)


def attention_forward(enc_output, params, max_length, *, num_steps=None):
    """enc_output: (B, C, H, W) float32.  Returns (g_output, attn_4d, attn)."""
    emb, w0, b0, wv, bv, we, be = params
    del be  # softmax(logits + be[l]) == softmax(logits): be has no effect on outputs
    B, C, H, W = enc_output.shape
    T = H * W
    L = max_length
    Lp = ((L + 7) // 8) * 8            # pad L (25 -> 32) for sublane alignment

    # Grid sizing: keep >= 2 steps (when B >= 2) so ("parallel",) shards across
    # v7x's two TensorCores; fold extra batches into the per-step block to
    # amortize the ~0.35 us/step overhead on single-TC v5e/v6e.
    # TODO(synk): for B == 1 on v7x, split T across the two cores instead.
    if num_steps is None:
        num_steps = min(B, 2)
    bb = -(-B // num_steps)            # batches per grid step (ceil)
    Bp = num_steps * bb                # padded batch

    # x in (C, T): free reshape of NCHW, left in f32 (cast to bf16 in-kernel).
    x_ct = enc_output.reshape(B, C, T)
    # x in (T, C): needed for the final attn @ x matmul (one small transpose+cast fusion).
    x_tc = jnp.transpose(enc_output, (0, 2, 3, 1)).reshape(B, T, C).astype(jnp.bfloat16)
    if Bp != B:
        pad = ((0, Bp - B), (0, 0), (0, 0))
        x_ct = jnp.pad(x_ct, pad)
        x_tc = jnp.pad(x_tc, pad)

    # Batch-invariant term hoisted out of the kernel; bv folded in; (C, T) layout.
    t0_ct = (w0 @ emb + b0[:, None] + bv[None, :]).T.astype(jnp.float32)  # (C, T)
    wv_b = wv.astype(jnp.bfloat16)                                        # (C, C)
    we_p = jnp.zeros((Lp, C), jnp.bfloat16).at[:L].set(we.astype(jnp.bfloat16))

    # Advisory cost estimate for XLA scheduling.
    flops = 2 * Bp * T * C * (C + 2 * Lp)
    transcendentals = Bp * (T * C + Lp * T + Lp)
    bytes_accessed = (Bp * T * C * (4 + 2)                  # x_ct f32 + x_tc bf16
                      + C * T * 4 + C * C * 2 + Lp * C * 2  # t0, Wv, We
                      + Bp * Lp * C * 4 + Bp * Lp * T * 4)  # outputs

    kernel = functools.partial(attention_kernel, bb=bb)

    g_p, attn_p = pl.pallas_call(
        kernel,
        out_shape=(jax.ShapeDtypeStruct((Bp, Lp, C), jnp.float32),
                   jax.ShapeDtypeStruct((Bp, Lp, T), jnp.float32)),
        grid_spec=pltpu.PrefetchScalarGridSpec(
            num_scalar_prefetch=0,
            grid=(num_steps,),
            in_specs=[
                pl.BlockSpec((bb, C, T), lambda s: (s, 0, 0)),   # x_ct (f32)
                pl.BlockSpec((bb, T, C), lambda s: (s, 0, 0)),   # x_tc (bf16)
                pl.BlockSpec((C, T),     lambda s: (0, 0)),      # t0_ct (= W0@Emb + b0 + bv)^T
                pl.BlockSpec((C, C),     lambda s: (0, 0)),      # Wv (bf16)
                pl.BlockSpec((Lp, C),    lambda s: (0, 0)),      # We padded (bf16)
            ],
            out_specs=[
                pl.BlockSpec((bb, Lp, C), lambda s: (s, 0, 0)),  # g_output
                pl.BlockSpec((bb, Lp, T), lambda s: (s, 0, 0)),  # attn
            ],
        ),
        compiler_params=pltpu.CompilerParams(
            dimension_semantics=("parallel",)),
        cost_estimate=pl.CostEstimate(
            flops=flops, transcendentals=transcendentals,
            bytes_accessed=bytes_accessed),
    )(x_ct, x_tc, t0_ct, wv_b, we_p)

    # slice away batch- and L-padding rows
    g = g_p[:B, :L, :]
    attn = attn_p[:B, :L, :]

    # torch: attn.view(*attn.shape[:2], 8, 32)  (requires T == 256)
    attn_4d = attn.reshape(B, L, 8, 32)
    return g, attn_4d, attn


def reference_forward(enc_output, params, max_length):
    emb, w0, b0, wv, bv, we, be = params
    B, C, H, W = enc_output.shape
    T = H * W
    x = jnp.transpose(enc_output, (0, 2, 3, 1)).reshape(B, T, C)
    t0 = w0 @ emb + b0[:, None]                              # (T, C)
    v = jnp.einsum('btc,dc->btd', x, wv) + bv                # (B, T, C)
    t = jnp.tanh(t0[None] + v)
    logits = jnp.einsum('btc,lc->btl', t, we) + be           # (B, T, L)
    attn = jax.nn.softmax(jnp.transpose(logits, (0, 2, 1)), axis=2)  # (B, L, T)
    g = jnp.einsum('blt,btc->blc', attn, x)
    return g, attn


def init_params(key, in_channels, max_length, n_feature):
    k = jax.random.split(key, 7)
    u = lambda kk, shape, fan_in: jax.random.uniform(
        kk, shape, jnp.float32, -1.0 / np.sqrt(fan_in), 1.0 / np.sqrt(fan_in))
    emb = jax.random.normal(k[0], (max_length, in_channels), jnp.float32)   # nn.Embedding
    w0 = u(k[1], (n_feature, max_length), max_length)                       # Linear(L -> n_feature)
    b0 = u(k[2], (n_feature,), max_length)
    wv = u(k[3], (in_channels, in_channels), in_channels)                   # Linear(C -> C)
    bv = u(k[4], (in_channels,), in_channels)
    we = u(k[5], (max_length, in_channels), in_channels)                    # Linear(C -> L)
    be = u(k[6], (max_length,), in_channels)
    return (emb, w0, b0, wv, bv, we, be)


if __name__ == "__main__":
    # The module's attn.view(..., 8, 32) forces H*W == n_feature == 256,
    # so H=8, W=32.  Channels shrunk to 128 for a small test.
    B, C, H, W = 2, 128, 8, 32
    max_length, n_feature = 25, H * W

    key = jax.random.PRNGKey(0)
    kx, kp = jax.random.split(key)
    enc_output = jax.random.normal(kx, (B, C, H, W), jnp.float32)
    params = init_params(kp, C, max_length, n_feature)

    fwd = jax.jit(functools.partial(attention_forward, max_length=max_length))
    g, attn_4d, attn = fwd(enc_output, params)
    g = jax.block_until_ready(g)
    attn_4d = jax.block_until_ready(attn_4d)
    attn = jax.block_until_ready(attn)

    g_ref, attn_ref = reference_forward(enc_output, params, max_length)
    assert g.shape == (B, max_length, C)
    assert attn_4d.shape == (B, max_length, 8, 32)
    # bf16 MXU operands (f32 accumulation) + approx reciprocal -> relaxed tolerances.
    np.testing.assert_allclose(np.asarray(attn), np.asarray(attn_ref), rtol=3e-2, atol=1e-3)
    np.testing.assert_allclose(np.asarray(g), np.asarray(g_ref), rtol=3e-2, atol=1e-2)

    print("KERNEL_OK")
</pallas_src>

<mosaic_0001>
module attributes {stable_mosaic.version = 11 : i64} {
  func.func @attention_kernel(%arg0: i32, %arg1: memref<1x128x256xf32, #tpu.memory_space<vmem>>, %arg2: memref<1x256x128xbf16, #tpu.memory_space<vmem>>, %arg3: memref<128x256xf32, #tpu.memory_space<vmem>>, %arg4: memref<128x128xbf16, #tpu.memory_space<vmem>>, %arg5: memref<32x128xbf16, #tpu.memory_space<vmem>>, %arg6: memref<1x32x128xf32, #tpu.memory_space<vmem>>, %arg7: memref<1x32x256xf32, #tpu.memory_space<vmem>>) attributes {dimension_semantics = [#tpu.dimension_semantics<parallel>], iteration_bounds = array<i64: 2>, scalar_prefetch = 0 : i64, scratch_operands = 0 : i64, tpu.core_type = #tpu.core_type<tc>, window_params = [{transform_indices = @transform_0, window_bounds = array<i64: 1, 128, 256>}, {transform_indices = @transform_1, window_bounds = array<i64: 1, 256, 128>}, {pipeline_mode = #tpu.pipeline_mode<synchronous>, transform_indices = @transform_2, window_bounds = array<i64: 128, 256>}, {pipeline_mode = #tpu.pipeline_mode<synchronous>, transform_indices = @transform_3, window_bounds = array<i64: 128, 128>}, {pipeline_mode = #tpu.pipeline_mode<synchronous>, transform_indices = @transform_4, window_bounds = array<i64: 32, 128>}, {transform_indices = @transform_5, window_bounds = array<i64: 1, 32, 128>}, {transform_indices = @transform_6, window_bounds = array<i64: 1, 32, 256>}]} {
    %c0 = arith.constant 0 : index
    %c0_0 = arith.constant 0 : index
    %0 = vector.load %arg3[%c0, %c0_0] : memref<128x256xf32, #tpu.memory_space<vmem>>, vector<128x256xf32>
    %c0_1 = arith.constant 0 : index
    %c0_2 = arith.constant 0 : index
    %1 = vector.load %arg4[%c0_1, %c0_2] : memref<128x128xbf16, #tpu.memory_space<vmem>>, vector<128x128xbf16>
    %c0_3 = arith.constant 0 : index
    %c0_4 = arith.constant 0 : index
    %2 = vector.load %arg5[%c0_3, %c0_4] : memref<32x128xbf16, #tpu.memory_space<vmem>>, vector<32x128xbf16>
    %c0_5 = arith.constant 0 : index
    %c0_6 = arith.constant 0 : index
    %c0_7 = arith.constant 0 : index
    %3 = vector.load %arg1[%c0_5, %c0_6, %c0_7] : memref<1x128x256xf32, #tpu.memory_space<vmem>>, vector<1x128x256xf32>
    %4 = vector.shape_cast %3 : vector<1x128x256xf32> to vector<128x256xf32>
    %5 = arith.truncf %4 : vector<128x256xf32> to vector<128x256xbf16>
    %cst = arith.constant dense<0.000000e+00> : vector<128x256xf32>
    %6 = tpu.matmul %1, %5, %cst {dimension_numbers = #tpu.dot_dimension_numbers<[1], [0], [0], [1], [0, 0, 1, 1], [], []>} : vector<128x128xbf16>, vector<128x256xbf16>, vector<128x256xf32> -> vector<128x256xf32>
    %7 = arith.addf %0, %6 : vector<128x256xf32>
    %8 = math.tanh %7 : vector<128x256xf32>
    %9 = arith.truncf %8 : vector<128x256xf32> to vector<128x256xbf16>
    %cst_8 = arith.constant dense<0.000000e+00> : vector<32x256xf32>
    %10 = tpu.matmul %2, %9, %cst_8 {dimension_numbers = #tpu.dot_dimension_numbers<[1], [0], [0], [1], [0, 0, 1, 1], [], []>} : vector<32x128xbf16>, vector<128x256xbf16>, vector<32x256xf32> -> vector<32x256xf32>
    %cst_9 = arith.constant dense<0xFF800000> : vector<32xf32>
    %11 = vector.multi_reduction <maximumf>, %10, %cst_9 [1] : vector<32x256xf32> to vector<32xf32>
    %12 = vector.shape_cast %11 : vector<32xf32> to vector<32x1xf32>
    %13 = vector.broadcast %12 : vector<32x1xf32> to vector<32x256xf32>
    %14 = arith.subf %10, %13 : vector<32x256xf32>
    %15 = math.exp %14 : vector<32x256xf32>
    %cst_10 = arith.constant dense<0.000000e+00> : vector<32xf32>
    %16 = vector.multi_reduction <add>, %15, %cst_10 [1] : vector<32x256xf32> to vector<32xf32>
    %17 = vector.shape_cast %16 : vector<32xf32> to vector<32x1xf32>
    %18 = tpu.reciprocal %17 {approx = true} : vector<32x1xf32> -> vector<32x1xf32>
    %19 = vector.broadcast %18 : vector<32x1xf32> to vector<32x256xf32>
    %20 = arith.mulf %15, %19 : vector<32x256xf32>
    %c0_11 = arith.constant 0 : index
    %c0_12 = arith.constant 0 : index
    %c0_13 = arith.constant 0 : index
    %21 = vector.load %arg7[%c0_11, %c0_12, %c0_13] : memref<1x32x256xf32, #tpu.memory_space<vmem>>, vector<1x32x256xf32>
    %22 = vector.shape_cast %21 : vector<1x32x256xf32> to vector<32x256xf32>
    %23 = vector.shape_cast %20 : vector<32x256xf32> to vector<1x32x256xf32>
    tpu.vector_store %arg7[%c0_11, %c0_12, %c0_13], %23 {strides = array<i32>} : memref<1x32x256xf32, #tpu.memory_space<vmem>>, vector<1x32x256xf32>,
    %24 = arith.truncf %20 : vector<32x256xf32> to vector<32x256xbf16>
    %c0_14 = arith.constant 0 : index
    %c0_15 = arith.constant 0 : index
    %c0_16 = arith.constant 0 : index
    %25 = vector.load %arg2[%c0_14, %c0_15, %c0_16] : memref<1x256x128xbf16, #tpu.memory_space<vmem>>, vector<1x256x128xbf16>
    %26 = vector.shape_cast %25 : vector<1x256x128xbf16> to vector<256x128xbf16>
    %cst_17 = arith.constant dense<0.000000e+00> : vector<32x128xf32>
    %27 = tpu.matmul %24, %26, %cst_17 {dimension_numbers = #tpu.dot_dimension_numbers<[1], [0], [0], [1], [0, 0, 1, 1], [], []>} : vector<32x256xbf16>, vector<256x128xbf16>, vector<32x128xf32> -> vector<32x128xf32>
    %c0_18 = arith.constant 0 : index
    %c0_19 = arith.constant 0 : index
    %c0_20 = arith.constant 0 : index
    %28 = vector.load %arg6[%c0_18, %c0_19, %c0_20] : memref<1x32x128xf32, #tpu.memory_space<vmem>>, vector<1x32x128xf32>
    %29 = vector.shape_cast %28 : vector<1x32x128xf32> to vector<32x128xf32>
    %30 = vector.shape_cast %27 : vector<32x128xf32> to vector<1x32x128xf32>
    tpu.vector_store %arg6[%c0_18, %c0_19, %c0_20], %30 {strides = array<i32>} : memref<1x32x128xf32, #tpu.memory_space<vmem>>, vector<1x32x128xf32>,
    return
  }
  func.func @transform_0(%arg0: i32) -> (i32, i32, i32) {
    %c0_i32 = arith.constant 0 : i32
    %c0_i32_0 = arith.constant 0 : i32
    %c0_i32_1 = arith.constant 0 : i32
    return %arg0, %c0_i32, %c0_i32_0 : i32, i32, i32
  }
  func.func @transform_1(%arg0: i32) -> (i32, i32, i32) {
    %c0_i32 = arith.constant 0 : i32
    %c0_i32_0 = arith.constant 0 : i32
    %c0_i32_1 = arith.constant 0 : i32
    return %arg0, %c0_i32, %c0_i32_0 : i32, i32, i32
  }
  func.func @transform_2(%arg0: i32) -> (i32, i32) {
    %c0_i32 = arith.constant 0 : i32
    %c0_i32_0 = arith.constant 0 : i32
    %c0_i32_1 = arith.constant 0 : i32
    return %c0_i32, %c0_i32_0 : i32, i32
  }
  func.func @transform_3(%arg0: i32) -> (i32, i32) {
    %c0_i32 = arith.constant 0 : i32
    %c0_i32_0 = arith.constant 0 : i32
    %c0_i32_1 = arith.constant 0 : i32
    return %c0_i32, %c0_i32_0 : i32, i32
  }
  func.func @transform_4(%arg0: i32) -> (i32, i32) {
    %c0_i32 = arith.constant 0 : i32
    %c0_i32_0 = arith.constant 0 : i32
    %c0_i32_1 = arith.constant 0 : i32
    return %c0_i32, %c0_i32_0 : i32, i32
  }
  func.func @transform_5(%arg0: i32) -> (i32, i32, i32) {
    %c0_i32 = arith.constant 0 : i32
    %c0_i32_0 = arith.constant 0 : i32
    %c0_i32_1 = arith.constant 0 : i32
    return %arg0, %c0_i32, %c0_i32_0 : i32, i32, i32
  }
  func.func @transform_6(%arg0: i32) -> (i32, i32, i32) {
    %c0_i32 = arith.constant 0 : i32
    %c0_i32_0 = arith.constant 0 : i32
    %c0_i32_1 = arith.constant 0 : i32
    return %arg0, %c0_i32, %c0_i32_0 : i32, i32, i32
  }
}

</mosaic_0001>

<llo_original>
// kernel: attention_forward.1
$region0: #{attention_forward.1}
  #allocation0 [shape = 'u32[]', space=smem, size = 0x4, offset = 0x4, fixed_abs, tag = 'smem constant byte address 0x4 - core index']
  #allocation1 [shape = 'u32[144,128]{1,0:T(1,128)}', space=vmem, size = 0x12000, scoped, tag = 'internal scratch']
  %s0 = inlined_call_operand.vmem [shape: f32[2,128,256], index: 0, kind: input, shape index: {}]
  %s1 = inlined_call_operand.vmem [shape: bf16[2,256,128], index: 1, kind: input, shape index: {}]
  %s2 = inlined_call_operand.vmem [shape: f32[128,256], index: 2, kind: input, shape index: {}]
  %s3 = inlined_call_operand.vmem [shape: bf16[128,128], index: 3, kind: input, shape index: {}]
  %s4 = inlined_call_operand.vmem [shape: bf16[32,128], index: 4, kind: input, shape index: {}]
  %s5 = inlined_call_operand.vmem [shape: f32[2,32,128], index: 5, kind: output, shape index: {0}]
  %s6 = inlined_call_operand.vmem [shape: f32[2,32,256], index: 6, kind: output, shape index: {1}]
  %7 = xla_tuple %s5, %s6
  %s8 = sld [smem:[#allocation0]]
  $region61: #{attention_forward.1} parent=0
    _
  %s10 = ssub.s32 1, %s8
  %s11 = scalar_select 0, %s10, %s8
  loop: start=0, step=1, limit=4
  $region2: #{attention_forward.1} parent=0 // loop_pre_header
    _
  $region3: #{attention_forward.1} parent=0 // loop_header
    %s13 = sphi 0, %s17
    %p14 = scmp.ge.s32.totalorder %s13, 4
    %s23 = sphi 0, %s25
    %s26 = sphi 0, %s23
    %s27 = sphi 0, %s26
    %s43 = sphi 0, %s27
    %s49 = sphi 0, %s51
    %s52 = sphi 0, %s49
    %s53 = sphi 0, %s52
    %s69 = sphi 0, %s53
    %s73 = sphi 0, %s73
    %s75 = sphi 0, %s73
    %s76 = sphi 0, %s75
    %s90 = sphi 0, %s76
    %s94 = sphi 0, %s94
    %s96 = sphi 0, %s94
    %s97 = sphi 0, %s96
    %s111 = sphi 0, %s97
    %s115 = sphi 0, %s115
    %s117 = sphi 0, %s115
    %s118 = sphi 0, %s117
    %s132 = sphi 0, %s118
    %s138 = sphi 0, %s140
    %s141 = sphi 0, %s138
    %s142 = sphi 0, %s141
    %s158 = sphi 0, %s142
    %s164 = sphi 0, %s166
    %s167 = sphi 0, %s164
    %s168 = sphi 0, %s167
    %s184 = sphi 0, %s168
  $region4: #{attention_forward.1} parent=0 // loop_header_branch
    %16 = sbr.rel (%p14) target = $region8
  $region5: #{attention_forward.1} parent=0 // loop_body
    %s18 = ssub.s32 %s13, 1
    %s19 = ssub.s32 %s13, 2
    %s20 = sadd.s32 %s13, 1
    %s21 = ssub.s32 %s13, %s20
    %p22 = scmp.eq.s32.totalorder %s21, 0
    %s24 = sadd.s32 %s23, 1
    %s25 = scalar_select %p22, %s23, %s24
    %p28 = pneg %p22
    %p29 = scmp.eq.s32.totalorder %s13, 1
    %p30 = por %p28, %p29
    %p31 = scmp.ne.s32.totalorder %s23, %s26
    %p32 = scmp.eq.s32.totalorder %s13, 0
    %p33 = por %p31, %p32
    %p34 = scmp.ne.s32.totalorder %s23, %s26
    %p35 = scmp.eq.s32.totalorder %s18, 1
    %p36 = por %p34, %p35
    %p37 = scmp.ne.s32.totalorder %s26, %s27
    %p38 = scmp.eq.s32.totalorder %s18, 0
    %p39 = por %p37, %p38
    %p40 = scmp.ne.s32.totalorder %s26, %s27
    %p41 = scmp.eq.s32.totalorder %s19, 1
    %p42 = por %p40, %p41
    %p44 = scmp.ne.s32.totalorder %s27, %s43
    %p45 = scmp.eq.s32.totalorder %s19, 0
    %p46 = por %p44, %p45
    %s47 = ssub.s32 %s13, %s20
    %p48 = scmp.eq.s32.totalorder %s47, 0
    %s50 = sadd.s32 %s49, 1
    %s51 = scalar_select %p48, %s49, %s50
    %p54 = pneg %p48
    %p55 = scmp.eq.s32.totalorder %s13, 1
    %p56 = por %p54, %p55
    %p57 = scmp.ne.s32.totalorder %s49, %s52
    %p58 = scmp.eq.s32.totalorder %s13, 0
    %p59 = por %p57, %p58
    %p60 = scmp.ne.s32.totalorder %s49, %s52
    %p61 = scmp.eq.s32.totalorder %s18, 1
    %p62 = por %p60, %p61
    %p63 = scmp.ne.s32.totalorder %s52, %s53
    %p64 = scmp.eq.s32.totalorder %s18, 0
    %p65 = por %p63, %p64
    %p66 = scmp.ne.s32.totalorder %s52, %s53
    %p67 = scmp.eq.s32.totalorder %s19, 1
    %p68 = por %p66, %p67
    %p70 = scmp.ne.s32.totalorder %s53, %s69
    %p71 = scmp.eq.s32.totalorder %s19, 0
    %p72 = por %p70, %p71
    %s74 = sadd.s32 %s73, 1
    %p77 = scmp.eq.s32.totalorder %s13, 1
    %p78 = scmp.ne.s32.totalorder %s73, %s75
    %p79 = scmp.eq.s32.totalorder %s13, 0
    %p80 = por %p78, %p79
    %p81 = scmp.ne.s32.totalorder %s73, %s75
    %p82 = scmp.eq.s32.totalorder %s18, 1
    %p83 = por %p81, %p82
    %p84 = scmp.ne.s32.totalorder %s75, %s76
    %p85 = scmp.eq.s32.totalorder %s18, 0
    %p86 = por %p84, %p85
    %p87 = scmp.ne.s32.totalorder %s75, %s76
    %p88 = scmp.eq.s32.totalorder %s19, 1
    %p89 = por %p87, %p88
    %p91 = scmp.ne.s32.totalorder %s76, %s90
    %p92 = scmp.eq.s32.totalorder %s19, 0
    %p93 = por %p91, %p92
    %s95 = sadd.s32 %s94, 1
    %p98 = scmp.eq.s32.totalorder %s13, 1
    %p99 = scmp.ne.s32.totalorder %s94, %s96
    %p100 = scmp.eq.s32.totalorder %s13, 0
    %p101 = por %p99, %p100
    %p102 = scmp.ne.s32.totalorder %s94, %s96
    %p103 = scmp.eq.s32.totalorder %s18, 1
    %p104 = por %p102, %p103
    %p105 = scmp.ne.s32.totalorder %s96, %s97
    %p106 = scmp.eq.s32.totalorder %s18, 0
    %p107 = por %p105, %p106
    %p108 = scmp.ne.s32.totalorder %s96, %s97
    %p109 = scmp.eq.s32.totalorder %s19, 1
    %p110 = por %p108, %p109
    %p112 = scmp.ne.s32.totalorder %s97, %s111
    %p113 = scmp.eq.s32.totalorder %s19, 0
    %p114 = por %p112, %p113
    %s116 = sadd.s32 %s115, 1
    %p119 = scmp.eq.s32.totalorder %s13, 1
    %p120 = scmp.ne.s32.totalorder %s115, %s117
    %p121 = scmp.eq.s32.totalorder %s13, 0
    %p122 = por %p120, %p121
    %p123 = scmp.ne.s32.totalorder %s115, %s117
    %p124 = scmp.eq.s32.totalorder %s18, 1
    %p125 = por %p123, %p124
    %p126 = scmp.ne.s32.totalorder %s117, %s118
    %p127 = scmp.eq.s32.totalorder %s18, 0
    %p128 = por %p126, %p127
    %p129 = scmp.ne.s32.totalorder %s117, %s118
    %p130 = scmp.eq.s32.totalorder %s19, 1
    %p131 = por %p129, %p130
    %p133 = scmp.ne.s32.totalorder %s118, %s132
    %p134 = scmp.eq.s32.totalorder %s19, 0
    %p135 = por %p133, %p134
    %s136 = ssub.s32 %s13, %s20
    %p137 = scmp.eq.s32.totalorder %s136, 0
    %s139 = sadd.s32 %s138, 1
    %s140 = scalar_select %p137, %s138, %s139
    %p143 = pneg %p137
    %p144 = scmp.eq.s32.totalorder %s13, 1
    %p145 = por %p143, %p144
    %p146 = scmp.ne.s32.totalorder %s138, %s141
    %p147 = scmp.eq.s32.totalorder %s13, 0
    %p148 = por %p146, %p147
    %p149 = scmp.ne.s32.totalorder %s138, %s141
    %p150 = scmp.eq.s32.totalorder %s18, 1
    %p151 = por %p149, %p150
    %p152 = scmp.ne.s32.totalorder %s141, %s142
    %p153 = scmp.eq.s32.totalorder %s18, 0
    %p154 = por %p152, %p153
    %p155 = scmp.ne.s32.totalorder %s141, %s142
    %p156 = scmp.eq.s32.totalorder %s19, 1
    %p157 = por %p155, %p156
    %p159 = scmp.ne.s32.totalorder %s142, %s158
    %p160 = scmp.eq.s32.totalorder %s19, 0
    %p161 = por %p159, %p160
    %s162 = ssub.s32 %s13, %s20
    %p163 = scmp.eq.s32.totalorder %s162, 0
    %s165 = sadd.s32 %s164, 1
    %s166 = scalar_select %p163, %s164, %s165
    %p169 = pneg %p163
    %p170 = scmp.eq.s32.totalorder %s13, 1
    %p171 = por %p169, %p170
    %p172 = scmp.ne.s32.totalorder %s164, %s167
    %p173 = scmp.eq.s32.totalorder %s13, 0
    %p174 = por %p172, %p173
    %p175 = scmp.ne.s32.totalorder %s164, %s167
    %p176 = scmp.eq.s32.totalorder %s18, 1
    %p177 = por %p175, %p176
    %p178 = scmp.ne.s32.totalorder %s167, %s168
    %p179 = scmp.eq.s32.totalorder %s18, 0
    %p180 = por %p178, %p179
    %p181 = scmp.ne.s32.totalorder %s167, %s168
    %p182 = scmp.eq.s32.totalorder %s19, 1
    %p183 = por %p181, %p182
    %p185 = scmp.ne.s32.totalorder %s168, %s184
    %p186 = scmp.eq.s32.totalorder %s19, 0
    %p187 = por %p185, %p186
    %p188 = scmp.le.s32.totalorder 1, %s13
    %p189 = scmp.lt.s32.totalorder %s13, 3
    %p190 = pnand %p188, %p189
    %p191 = pneg %p190
    // Predicated region
    $region9: #{attention_forward.1} parent=5 // pred_check
      _
    $region10: #{attention_forward.1} parent=5 // pred_check_branch
      %193 = sbr.rel (%p190) target = $region12
    $region11: #{attention_forward.1} parent=5 // pred_region
      %s194 = ssub.s32 %s13, 1
      // Predicated region
      $region13: #{attention_forward.1} parent=11 // pred_check
        %p195 = pneg %p86
      $region14: #{attention_forward.1} parent=11 // pred_check_branch
        %197 = sbr.rel (%p195) target = $region16
      $region15: #{attention_forward.1} parent=11 // pred_region
        _
      $region16: #{attention_forward.1} parent=11 // pred_fallthru
        _
      // Predicated region
      $region17: #{attention_forward.1} parent=11 // pred_check
        %p198 = pneg %p107
      $region18: #{attention_forward.1} parent=11 // pred_check_branch
        %200 = sbr.rel (%p198) target = $region20
      $region19: #{attention_forward.1} parent=11 // pred_region
        _
      $region20: #{attention_forward.1} parent=11 // pred_fallthru
        _
      // Predicated region
      $region21: #{attention_forward.1} parent=11 // pred_check
        %p201 = pneg %p128
      $region22: #{attention_forward.1} parent=11 // pred_check_branch
        %203 = sbr.rel (%p201) target = $region24
      $region23: #{attention_forward.1} parent=11 // pred_region
        _
      $region24: #{attention_forward.1} parent=11 // pred_fallthru
        _
    $region12: #{attention_forward.1} parent=5 // pred_fallthru
      _
    %p204 = scmp.lt.s32.totalorder %s13, 2
    // Predicated region
    $region25: #{attention_forward.1} parent=5 // pred_check
      %p205 = pneg %p204
    $region26: #{attention_forward.1} parent=5 // pred_check_branch
      %207 = sbr.rel (%p205) target = $region28
    $region27: #{attention_forward.1} parent=5 // pred_region
      // Predicated region
      $region29: #{attention_forward.1} parent=27 // pred_check
        %p208 = pneg %p33
      $region30: #{attention_forward.1} parent=27 // pred_check_branch
        %210 = sbr.rel (%p208) target = $region32
      $region31: #{attention_forward.1} parent=27 // pred_region
        %p211 = scmp.lt.s32.totalorder %s13, 1
        %s212 = scalar_select %p211, %s13, 1
        %s213 = smul.addr %s212, 32
        %s214 = smul.addr %s213, 8
        %s215 = scalar_lea.vmem %s0, %s214
      $region32: #{attention_forward.1} parent=27 // pred_fallthru
        _
      // Predicated region
      $region33: #{attention_forward.1} parent=27 // pred_check
        %p216 = pneg %p59
      $region34: #{attention_forward.1} parent=27 // pred_check_branch
        %218 = sbr.rel (%p216) target = $region36
      $region35: #{attention_forward.1} parent=27 // pred_region
        %p219 = scmp.lt.s32.totalorder %s13, 1
        %s220 = scalar_select %p219, %s13, 1
        %s221 = smul.addr %s220, 32
        %s222 = smul.addr %s221, 4
        %s223 = scalar_lea.vmem %s1, %s222
      $region36: #{attention_forward.1} parent=27 // pred_fallthru
        _
    $region28: #{attention_forward.1} parent=5 // pred_fallthru
      _
    %p224 = scmp.le.s32.totalorder 1, %s13
    %p225 = scmp.lt.s32.totalorder %s13, 3
    %p226 = pnand %p224, %p225
    %p227 = pneg %p226
    // Predicated region
    $region37: #{attention_forward.1} parent=5 // pred_check
      _
    $region38: #{attention_forward.1} parent=5 // pred_check_branch
      %229 = sbr.rel (%p226) target = $region40
    $region39: #{attention_forward.1} parent=5 // pred_region
      %s230 = ssub.s32 %s13, 1
      %p231 = scmp.lt.s32.totalorder %s18, 1
      %s232 = scalar_select %p231, %s18, 1
      %s233 = smul.addr %s232, 32
      %s234 = smul.addr %s233, 8
      %s235 = scalar_lea.vmem %s0, %s234
      %p236 = pneg %p39
      %p237 = pneg %p36
      %p238 = scmp.lt.s32.totalorder %s18, 1
      %s239 = scalar_select %p238, %s18, 1
      %s240 = smul.addr %s239, 32
      %s241 = smul.addr %s240, 4
      %s242 = scalar_lea.vmem %s1, %s241
      %p243 = pneg %p65
      %p244 = pneg %p62
      %p245 = pneg %p86
      %p246 = pneg %p83
      %p247 = pneg %p107
      %p248 = pneg %p104
      %p249 = pneg %p128
      %p250 = pneg %p125
      %p251 = pneg %p154
      %p252 = pneg %p151
      %p253 = scmp.lt.s32.totalorder %s18, 1
      %s254 = scalar_select %p253, %s18, 1
      %s255 = smul.addr %s254, 4
      %s256 = smul.addr %s255, 8
      %s257 = scalar_lea.vmem %s5, %s256
      %p258 = pneg %p180
      %p259 = pneg %p177
      %p260 = scmp.lt.s32.totalorder %s18, 1
      %s261 = scalar_select %p260, %s18, 1
      %s262 = smul.addr %s261, 8
      %s263 = smul.addr %s262, 8
      %s264 = scalar_lea.vmem %s6, %s263
      %p265 = scmp.lt.s32.totalorder %s18, 1
      %s266 = scalar_select %p265, %s18, 1
      %s267 = smul.addr %s266, 32
      %s268 = smul.addr %s267, 8
      %s269 = scalar_lea.vmem %s0, %s268
      %p270 = scmp.lt.s32.totalorder %s18, 1
      %s271 = scalar_select %p270, %s18, 1
      %s272 = smul.addr %s271, 32
      %s273 = smul.addr %s272, 4
      %s274 = scalar_lea.vmem %s1, %s273
      %p275 = scmp.lt.s32.totalorder %s18, 1
      %s276 = scalar_select %p275, %s18, 1
      %s277 = smul.addr %s276, 4
      %s278 = smul.addr %s277, 8
      %s279 = scalar_lea.vmem %s5, %s278
      %p280 = scmp.lt.s32.totalorder %s18, 1
      %s281 = scalar_select %p280, %s18, 1
      %s282 = smul.addr %s281, 8
      %s283 = smul.addr %s282, 8
      %s284 = scalar_lea.vmem %s6, %s283
      %v286 = vld [vmem:[%s2] sm:$0xff]
      %v287 = vld [vmem:[%s2 + $0x8] sm:$0xff]
      %v288 = vld [vmem:[%s2 + $0x10] sm:$0xff]
      %v289 = vld [vmem:[%s2 + $0x18] sm:$0xff]
      %v290 = vld [vmem:[%s2 + $0x20] sm:$0xff]
      %v291 = vld [vmem:[%s2 + $0x28] sm:$0xff]
      %v292 = vld [vmem:[%s2 + $0x30] sm:$0xff]
      %v293 = vld [vmem:[%s2 + $0x38] sm:$0xff]
      %v294 = vld [vmem:[%s2 + $0x40] sm:$0xff]
      %v295 = vld [vmem:[%s2 + $0x48] sm:$0xff]
      %v296 = vld [vmem:[%s2 + $0x50] sm:$0xff]
      %v297 = vld [vmem:[%s2 + $0x58] sm:$0xff]
      %v298 = vld [vmem:[%s2 + $0x60] sm:$0xff]
      %v299 = vld [vmem:[%s2 + $0x68] sm:$0xff]
      %v300 = vld [vmem:[%s2 + $0x70] sm:$0xff]
      %v301 = vld [vmem:[%s2 + $0x78] sm:$0xff]
      %v302 = vld [vmem:[%s2 + $0x80] sm:$0xff]
      %v303 = vld [vmem:[%s2 + $0x88] sm:$0xff]
      %v304 = vld [vmem:[%s2 + $0x90] sm:$0xff]
      %v305 = vld [vmem:[%s2 + $0x98] sm:$0xff]
      %v306 = vld [vmem:[%s2 + $0xa0] sm:$0xff]
      %v307 = vld [vmem:[%s2 + $0xa8] sm:$0xff]
      %v308 = vld [vmem:[%s2 + $0xb0] sm:$0xff]
      %v309 = vld [vmem:[%s2 + $0xb8] sm:$0xff]
      %v310 = vld [vmem:[%s2 + $0xc0] sm:$0xff]
      %v311 = vld [vmem:[%s2 + $0xc8] sm:$0xff]
      %v312 = vld [vmem:[%s2 + $0xd0] sm:$0xff]
      %v313 = vld [vmem:[%s2 + $0xd8] sm:$0xff]
      %v314 = vld [vmem:[%s2 + $0xe0] sm:$0xff]
      %v315 = vld [vmem:[%s2 + $0xe8] sm:$0xff]
      %v316 = vld [vmem:[%s2 + $0xf0] sm:$0xff]
      %v317 = vld [vmem:[%s2 + $0xf8] sm:$0xff]
      %v318 = vld [vmem:[%s3] sm:$0xf]
      %v319 = vld [vmem:[%s3 + $0x4] sm:$0xf]
      %v320 = vld [vmem:[%s3 + $0x8] sm:$0xf]
      %v321 = vld [vmem:[%s3 + $0xc] sm:$0xf]
      %v322 = vld [vmem:[%s3 + $0x10] sm:$0xf]
      %v323 = vld [vmem:[%s3 + $0x14] sm:$0xf]
      %v324 = vld [vmem:[%s3 + $0x18] sm:$0xf]
      %v325 = vld [vmem:[%s3 + $0x1c] sm:$0xf]
      %v326 = vld [vmem:[%s3 + $0x20] sm:$0xf]
      %v327 = vld [vmem:[%s3 + $0x24] sm:$0xf]
      %v328 = vld [vmem:[%s3 + $0x28] sm:$0xf]
      %v329 = vld [vmem:[%s3 + $0x2c] sm:$0xf]
      %v330 = vld [vmem:[%s3 + $0x30] sm:$0xf]
      %v331 = vld [vmem:[%s3 + $0x34] sm:$0xf]
      %v332 = vld [vmem:[%s3 + $0x38] sm:$0xf]
      %v333 = vld [vmem:[%s3 + $0x3c] sm:$0xf]
      %v334 = vld [vmem:[%s4] sm:$0xf]
      %v335 = vld [vmem:[%s4 + $0x4] sm:$0xf]
      %v336 = vld [vmem:[%s4 + $0x8] sm:$0xf]
      %v337 = vld [vmem:[%s4 + $0xc] sm:$0xf]
      %v338 = vld [vmem:[%s269] sm:$0xff]
      %v339 = vld [vmem:[%s269 + $0x8] sm:$0xff]
      %v340 = vld [vmem:[%s269 + $0x10] sm:$0xff]
      %v341 = vld [vmem:[%s269 + $0x18] sm:$0xff]
      %v342 = vld [vmem:[%s269 + $0x20] sm:$0xff]
      %v343 = vld [vmem:[%s269 + $0x28] sm:$0xff]
      %v344 = vld [vmem:[%s269 + $0x30] sm:$0xff]
      %v345 = vld [vmem:[%s269 + $0x38] sm:$0xff]
      %v346 = vld [vmem:[%s269 + $0x40] sm:$0xff]
      %v347 = vld [vmem:[%s269 + $0x48] sm:$0xff]
      %v348 = vld [vmem:[%s269 + $0x50] sm:$0xff]
      %v349 = vld [vmem:[%s269 + $0x58] sm:$0xff]
      %v350 = vld [vmem:[%s269 + $0x60] sm:$0xff]
      %v351 = vld [vmem:[%s269 + $0x68] sm:$0xff]
      %v352 = vld [vmem:[%s269 + $0x70] sm:$0xff]
      %v353 = vld [vmem:[%s269 + $0x78] sm:$0xff]
      %v354 = vld [vmem:[%s269 + $0x80] sm:$0xff]
      %v355 = vld [vmem:[%s269 + $0x88] sm:$0xff]
      %v356 = vld [vmem:[%s269 + $0x90] sm:$0xff]
      %v357 = vld [vmem:[%s269 + $0x98] sm:$0xff]
      %v358 = vld [vmem:[%s269 + $0xa0] sm:$0xff]
      %v359 = vld [vmem:[%s269 + $0xa8] sm:$0xff]
      %v360 = vld [vmem:[%s269 + $0xb0] sm:$0xff]
      %v361 = vld [vmem:[%s269 + $0xb8] sm:$0xff]
      %v362 = vld [vmem:[%s269 + $0xc0] sm:$0xff]
      %v363 = vld [vmem:[%s269 + $0xc8] sm:$0xff]
      %v364 = vld [vmem:[%s269 + $0xd0] sm:$0xff]
      %v365 = vld [vmem:[%s269 + $0xd8] sm:$0xff]
      %v366 = vld [vmem:[%s269 + $0xe0] sm:$0xff]
      %v367 = vld [vmem:[%s269 + $0xe8] sm:$0xff]
      %v368 = vld [vmem:[%s269 + $0xf0] sm:$0xff]
      %v369 = vld [vmem:[%s269 + $0xf8] sm:$0xff]
      %v370 = vpack.c.bf16 %v340, %v338
      %v371 = vpack.c.bf16 %v341, %v339
      %v372 = vpack.c.bf16 %v344, %v342
      %v373 = vpack.c.bf16 %v345, %v343
      %v374 = vpack.c.bf16 %v348, %v346
      %v375 = vpack.c.bf16 %v349, %v347
      %v376 = vpack.c.bf16 %v352, %v350
      %v377 = vpack.c.bf16 %v353, %v351
      %v378 = vpack.c.bf16 %v356, %v354
      %v379 = vpack.c.bf16 %v357, %v355
      %v380 = vpack.c.bf16 %v360, %v358
      %v381 = vpack.c.bf16 %v361, %v359
      %v382 = vpack.c.bf16 %v364, %v362
      %v383 = vpack.c.bf16 %v365, %v363
      %v384 = vpack.c.bf16 %v368, %v366
      %v385 = vpack.c.bf16 %v369, %v367
      %v402 = vunpack.c.l.b16 %v318
      %v403 = vunpack.c.l.b16 %v319
      %v404 = vunpack.c.l.b16 %v320
      %v405 = vunpack.c.l.b16 %v321
      %v406 = vunpack.c.l.b16 %v322
      %v407 = vunpack.c.l.b16 %v323
      %v408 = vunpack.c.l.b16 %v324
      %v409 = vunpack.c.l.b16 %v325
      %v410 = vunpack.c.l.b16 %v326
      %v411 = vunpack.c.l.b16 %v327
      %v412 = vunpack.c.l.b16 %v328
      %v413 = vunpack.c.l.b16 %v329
      %v414 = vunpack.c.l.b16 %v330
      %v415 = vunpack.c.l.b16 %v331
      %v416 = vunpack.c.l.b16 %v332
      %v417 = vunpack.c.l.b16 %v333
      %v418 = vpack.c.b16 %v403, %v402
      %v419 = vpack.c.b16 %v405, %v404
      %v420 = vpack.c.b16 %v407, %v406
      %v421 = vpack.c.b16 %v409, %v408
      %v422 = vpack.c.b16 %v411, %v410
      %v423 = vpack.c.b16 %v413, %v412
      %v424 = vpack.c.b16 %v415, %v414
      %v425 = vpack.c.b16 %v417, %v416
      %434 = vmatprep.subr.bf16.mxu0 %v371
      %435 = vmatpush1.bf16.msra.mxu0 %v370
      %436 = vmatprep.subr.bf16.mxu0 %v373
      %437 = vmatpush1.bf16.msra.mxu0 %v372
      %438 = vmatprep.subr.bf16.mxu0 %v375
      %439 = vmatpush1.bf16.msra.mxu0 %v374
      %440 = vmatprep.subr.bf16.mxu0 %v377
      %441 = vmatpush1.bf16.msra.mxu0 %v376
      %442 = vmatprep.subr.bf16.mxu0 %v379
      %443 = vmatpush1.bf16.msra.mxu0 %v378
      %444 = vmatprep.subr.bf16.mxu0 %v381
      %445 = vmatpush1.bf16.msra.mxu0 %v380
      %446 = vmatprep.subr.bf16.mxu0 %v383
      %447 = vmatpush1.bf16.msra.mxu0 %v382
      %448 = vmatprep.subr.bf16.mxu0 %v385
      %449 = vmatpush1.bf16.msra.mxu0 %v384
      %450 = vmatprep.subr.bf16.mxu0 0
      %451 = vmatpush1.bf16.msra.mxu0 0
      %452 = vmatprep.subr.bf16.mxu0 0
      %453 = vmatpush1.bf16.msra.mxu0 0
      %454 = vmatprep.subr.bf16.mxu0 0
      %455 = vmatpush1.bf16.msra.mxu0 0
      %456 = vmatprep.subr.bf16.mxu0 0
      %457 = vmatpush1.bf16.msra.mxu0 0
      %458 = vmatprep.subr.bf16.mxu0 0
      %459 = vmatpush1.bf16.msra.mxu0 0
      %460 = vmatprep.subr.bf16.mxu0 0
      %461 = vmatpush1.bf16.msra.mxu0 0
      %462 = vmatprep.subr.bf16.mxu0 0
      %463 = vmatpush1.bf16.msra.mxu0 0
      %464 = vmatprep.subr.bf16.mxu0 0
      %465 = vmatpush1.bf16.msra.mxu0 0
      %466 = vmatprep.mubr.bf16.mxu0 0
      %467 = vmatmul.mubr.bf16.gmra.mrb[0].mxu0 %v418
      %v468 = vpop.f32.mrb[0].mxu0
      %v469 = vadd.f32 0.0, %v468
      %v470 = vpop.f32.mrb[0].mxu0
      %v471 = vadd.f32 0.0, %v470
      %v472 = vpop.f32.mrb[0].mxu0
      %v473 = vadd.f32 0.0, %v472
      %v474 = vpop.f32.mrb[0].mxu0
      %v475 = vadd.f32 0.0, %v474
      %476 = vmatprep.mubr.bf16.mxu0 0
      %477 = vmatmul.mubr.bf16.gmra.mrb[0].mxu0 %v419
      %v478 = vpop.f32.mrb[0].mxu0
      %v479 = vadd.f32 0.0, %v478
      %v480 = vpop.f32.mrb[0].mxu0
      %v481 = vadd.f32 0.0, %v480
      %v482 = vpop.f32.mrb[0].mxu0
      %v483 = vadd.f32 0.0, %v482
      %v484 = vpop.f32.mrb[0].mxu0
      %v485 = vadd.f32 0.0, %v484
      %486 = vmatprep.mubr.bf16.mxu0 0
      %487 = vmatmul.mubr.bf16.gmra.mrb[0].mxu0 %v420
      %v488 = vpop.f32.mrb[0].mxu0
      %v489 = vadd.f32 0.0, %v488
      %v490 = vpop.f32.mrb[0].mxu0
      %v491 = vadd.f32 0.0, %v490
      %v492 = vpop.f32.mrb[0].mxu0
      %v493 = vadd.f32 0.0, %v492
      %v494 = vpop.f32.mrb[0].mxu0
      %v495 = vadd.f32 0.0, %v494
      %496 = vmatprep.mubr.bf16.mxu0 0
      %497 = vmatmul.mubr.bf16.gmra.mrb[0].mxu0 %v421
      %v498 = vpop.f32.mrb[0].mxu0
      %v499 = vadd.f32 0.0, %v498
      %v500 = vpop.f32.mrb[0].mxu0
      %v501 = vadd.f32 0.0, %v500
      %v502 = vpop.f32.mrb[0].mxu0
      %v503 = vadd.f32 0.0, %v502
      %v504 = vpop.f32.mrb[0].mxu0
      %v505 = vadd.f32 0.0, %v504
      %506 = vmatprep.mubr.bf16.mxu0 0
      %507 = vmatmul.mubr.bf16.gmra.mrb[0].mxu0 %v422
      %v508 = vpop.f32.mrb[0].mxu0
      %v509 = vadd.f32 0.0, %v508
      %v510 = vpop.f32.mrb[0].mxu0
      %v511 = vadd.f32 0.0, %v510
      %v512 = vpop.f32.mrb[0].mxu0
      %v513 = vadd.f32 0.0, %v512
      %v514 = vpop.f32.mrb[0].mxu0
      %v515 = vadd.f32 0.0, %v514
      %516 = vmatprep.mubr.bf16.mxu0 0
      %517 = vmatmul.mubr.bf16.gmra.mrb[0].mxu0 %v423
      %v518 = vpop.f32.mrb[0].mxu0
      %v519 = vadd.f32 0.0, %v518
      %v520 = vpop.f32.mrb[0].mxu0
      %v521 = vadd.f32 0.0, %v520
      %v522 = vpop.f32.mrb[0].mxu0
      %v523 = vadd.f32 0.0, %v522
      %v524 = vpop.f32.mrb[0].mxu0
      %v525 = vadd.f32 0.0, %v524
      %526 = vmatprep.mubr.bf16.mxu0 0
      %527 = vmatmul.mubr.bf16.gmra.mrb[0].mxu0 %v424
      %v528 = vpop.f32.mrb[0].mxu0
      %v529 = vadd.f32 0.0, %v528
      %v530 = vpop.f32.mrb[0].mxu0
      %v531 = vadd.f32 0.0, %v530
      %v532 = vpop.f32.mrb[0].mxu0
      %v533 = vadd.f32 0.0, %v532
      %v534 = vpop.f32.mrb[0].mxu0
      %v535 = vadd.f32 0.0, %v534
      %536 = vmatprep.mubr.bf16.mxu0 0
      %537 = vmatmul.mubr.bf16.gmra.mrb[0].mxu0 %v425
      %v538 = vpop.f32.mrb[0].mxu0
      %v539 = vadd.f32 0.0, %v538
      %v540 = vpop.f32.mrb[0].mxu0
      %v541 = vadd.f32 0.0, %v540
      %v542 = vpop.f32.mrb[0].mxu0
      %v543 = vadd.f32 0.0, %v542
      %v544 = vpop.f32.mrb[0].mxu0
      %v545 = vadd.f32 0.0, %v544
      %546 = vdwg.mxu0
      %v547 = vadd.f32 %v286, %v469
      %v548 = vadd.f32 %v287, %v471
      %v549 = vadd.f32 %v288, %v473
      %v550 = vadd.f32 %v289, %v475
      %v551 = vadd.f32 %v290, %v479
      %v552 = vadd.f32 %v291, %v481
      %v553 = vadd.f32 %v292, %v483
      %v554 = vadd.f32 %v293, %v485
      %v555 = vadd.f32 %v294, %v489
      %v556 = vadd.f32 %v295, %v491
      %v557 = vadd.f32 %v296, %v493
      %v558 = vadd.f32 %v297, %v495
      %v559 = vadd.f32 %v298, %v499
      %v560 = vadd.f32 %v299, %v501
      %v561 = vadd.f32 %v300, %v503
      %v562 = vadd.f32 %v301, %v505
      %v563 = vadd.f32 %v302, %v509
      %v564 = vadd.f32 %v303, %v511
      %v565 = vadd.f32 %v304, %v513
      %v566 = vadd.f32 %v305, %v515
      %v567 = vadd.f32 %v306, %v519
      %v568 = vadd.f32 %v307, %v521
      %v569 = vadd.f32 %v308, %v523
      %v570 = vadd.f32 %v309, %v525
      %v571 = vadd.f32 %v310, %v529
      %v572 = vadd.f32 %v311, %v531
      %v573 = vadd.f32 %v312, %v533
      %v574 = vadd.f32 %v313, %v535
      %v575 = vadd.f32 %v314, %v539
      %v576 = vadd.f32 %v315, %v541
      %v577 = vadd.f32 %v316, %v543
      %v578 = vadd.f32 %v317, %v545
      %v579 = vtanh.pop %v547
      %v580 = vtanh.pop %v548
      %v581 = vtanh.pop %v549
      %v582 = vtanh.pop %v550
      %v583 = vtanh.pop %v551
      %v584 = vtanh.pop %v552
      %v585 = vtanh.pop %v553
      %v586 = vtanh.pop %v554
      %v587 = vtanh.pop %v555
      %v588 = vtanh.pop %v556
      %v589 = vtanh.pop %v557
      %v590 = vtanh.pop %v558
      %v591 = vtanh.pop %v559
      %v592 = vtanh.pop %v560
      %v593 = vtanh.pop %v561
      %v594 = vtanh.pop %v562
      %v595 = vtanh.pop %v563
      %v596 = vtanh.pop %v564
      %v597 = vtanh.pop %v565
      %v598 = vtanh.pop %v566
      %v599 = vtanh.pop %v567
      %v600 = vtanh.pop %v568
      %v601 = vtanh.pop %v569
      %v602 = vtanh.pop %v570
      %v603 = vtanh.pop %v571
      %v604 = vtanh.pop %v572
      %v605 = vtanh.pop %v573
      %v606 = vtanh.pop %v574
      %v607 = vtanh.pop %v575
      %v608 = vtanh.pop %v576
      %v609 = vtanh.pop %v577
      %v610 = vtanh.pop %v578
      %v611 = vpack.c.bf16 %v581, %v579
      %v612 = vpack.c.bf16 %v582, %v580
      %v613 = vpack.c.bf16 %v585, %v583
      %v614 = vpack.c.bf16 %v586, %v584
      %v615 = vpack.c.bf16 %v589, %v587
      %v616 = vpack.c.bf16 %v590, %v588
      %v617 = vpack.c.bf16 %v593, %v591
      %v618 = vpack.c.bf16 %v594, %v592
      %v619 = vpack.c.bf16 %v597, %v595
      %v620 = vpack.c.bf16 %v598, %v596
      %v621 = vpack.c.bf16 %v601, %v599
      %v622 = vpack.c.bf16 %v602, %v600
      %v623 = vpack.c.bf16 %v605, %v603
      %v624 = vpack.c.bf16 %v606, %v604
      %v625 = vpack.c.bf16 %v609, %v607
      %v626 = vpack.c.bf16 %v610, %v608
      %v631 = vunpack.c.l.b16 %v334
      %v632 = vunpack.c.l.b16 %v335
      %v633 = vunpack.c.l.b16 %v336
      %v634 = vunpack.c.l.b16 %v337
      %v635 = vpack.c.b16 %v632, %v631
      %v636 = vpack.c.b16 %v634, %v633
      %639 = vmatprep.subr.bf16.mxu0 %v612
      %640 = vmatpush1.bf16.msra.mxu0 %v611
      %641 = vmatprep.subr.bf16.mxu0 %v614
      %642 = vmatpush1.bf16.msra.mxu0 %v613
      %643 = vmatprep.subr.bf16.mxu0 %v616
      %644 = vmatpush1.bf16.msra.mxu0 %v615
      %645 = vmatprep.subr.bf16.mxu0 %v618
      %646 = vmatpush1.bf16.msra.mxu0 %v617
      %647 = vmatprep.subr.bf16.mxu0 %v620
      %648 = vmatpush1.bf16.msra.mxu0 %v619
      %649 = vmatprep.subr.bf16.mxu0 %v622
      %650 = vmatpush1.bf16.msra.mxu0 %v621
      %651 = vmatprep.subr.bf16.mxu0 %v624
      %652 = vmatpush1.bf16.msra.mxu0 %v623
      %653 = vmatprep.subr.bf16.mxu0 %v626
      %654 = vmatpush1.bf16.msra.mxu0 %v625
      %655 = vmatprep.subr.bf16.mxu0 0
      %656 = vmatpush1.bf16.msra.mxu0 0
      %657 = vmatprep.subr.bf16.mxu0 0
      %658 = vmatpush1.bf16.msra.mxu0 0
      %659 = vmatprep.subr.bf16.mxu0 0
      %660 = vmatpush1.bf16.msra.mxu0 0
      %661 = vmatprep.subr.bf16.mxu0 0
      %662 = vmatpush1.bf16.msra.mxu0 0
      %663 = vmatprep.subr.bf16.mxu0 0
      %664 = vmatpush1.bf16.msra.mxu0 0
      %665 = vmatprep.subr.bf16.mxu0 0
      %666 = vmatpush1.bf16.msra.mxu0 0
      %667 = vmatprep.subr.bf16.mxu0 0
      %668 = vmatpush1.bf16.msra.mxu0 0
      %669 = vmatprep.subr.bf16.mxu0 0
      %670 = vmatpush1.bf16.msra.mxu0 0
      %671 = vmatprep.mubr.bf16.mxu0 0
      %672 = vmatmul.mubr.bf16.gmra.mrb[0].mxu0 %v635
      %v673 = vpop.f32.mrb[0].mxu0
      %v674 = vadd.f32 0.0, %v673
      %v675 = vpop.f32.mrb[0].mxu0
      %v676 = vadd.f32 0.0, %v675
      %v677 = vpop.f32.mrb[0].mxu0
      %v678 = vadd.f32 0.0, %v677
      %v679 = vpop.f32.mrb[0].mxu0
      %v680 = vadd.f32 0.0, %v679
      %681 = vmatprep.mubr.bf16.mxu0 0
      %682 = vmatmul.mubr.bf16.gmra.mrb[0].mxu0 %v636
      %v683 = vpop.f32.mrb[0].mxu0
      %v684 = vadd.f32 0.0, %v683
      %v685 = vpop.f32.mrb[0].mxu0
      %v686 = vadd.f32 0.0, %v685
      %v687 = vpop.f32.mrb[0].mxu0
      %v688 = vadd.f32 0.0, %v687
      %v689 = vpop.f32.mrb[0].mxu0
      %v690 = vadd.f32 0.0, %v689
      %691 = vdwg.mxu0
      %v692 = vmax.f32 %v674, %v676
      %693 = vmax.xlane.f32.xlu0 %v692
      %v694 = vpop.xlane.xlu0 %693
      %v695 = vmax.f32 %v678, %v680
      %696 = vmax.xlane.f32.xlu0 %v695
      %v697 = vpop.xlane.xlu0 %696
      %v698 = vmax.f32 %v684, %v686
      %699 = vmax.xlane.f32.xlu0 %v698
      %v700 = vpop.xlane.xlu0 %699
      %v701 = vmax.f32 %v688, %v690
      %702 = vmax.xlane.f32.xlu0 %v701
      %v703 = vpop.xlane.xlu0 %702
      %v704 = vsub.f32 %v674, %v694
      %v705 = vsub.f32 %v676, %v694
      %v706 = vsub.f32 %v678, %v697
      %v707 = vsub.f32 %v680, %v697
      %v708 = vsub.f32 %v684, %v700
      %v709 = vsub.f32 %v686, %v700
      %v710 = vsub.f32 %v688, %v703
      %v711 = vsub.f32 %v690, %v703
      %v712 = vmul.f32 %v704, 1.442695
      %v713 = vpow.pop %v712
      %v714 = vmul.f32 %v705, 1.442695
      %v715 = vpow.pop %v714
      %v716 = vmul.f32 %v706, 1.442695
      %v717 = vpow.pop %v716
      %v718 = vmul.f32 %v707, 1.442695
      %v719 = vpow.pop %v718
      %v720 = vmul.f32 %v708, 1.442695
      %v721 = vpow.pop %v720
      %v722 = vmul.f32 %v709, 1.442695
      %v723 = vpow.pop %v722
      %v724 = vmul.f32 %v710, 1.442695
      %v725 = vpow.pop %v724
      %v726 = vmul.f32 %v711, 1.442695
      %v727 = vpow.pop %v726
      %v728 = vadd.f32 %v713, %v715
      %729 = vadd.xlane.f32.xlu0 %v728
      %v730 = vpop.xlane.xlu0 %729
      %v731 = vadd.f32 %v717, %v719
      %732 = vadd.xlane.f32.xlu0 %v731
      %v733 = vpop.xlane.xlu0 %732
      %v734 = vadd.f32 %v721, %v723
      %735 = vadd.xlane.f32.xlu0 %v734
      %v736 = vpop.xlane.xlu0 %735
      %v737 = vadd.f32 %v725, %v727
      %738 = vadd.xlane.f32.xlu0 %v737
      %v739 = vpop.xlane.xlu0 %738
      %v740 = vrcp.pop %v730
      %v741 = vrcp.pop %v733
      %v742 = vrcp.pop %v736
      %v743 = vrcp.pop %v739
      %v744 = vmul.f32 %v713, %v740
      %v745 = vmul.f32 %v715, %v740
      %v746 = vmul.f32 %v717, %v741
      %v747 = vmul.f32 %v719, %v741
      %v748 = vmul.f32 %v721, %v742
      %v749 = vmul.f32 %v723, %v742
      %v750 = vmul.f32 %v725, %v743
      %v751 = vmul.f32 %v727, %v743
      %752 = vst [vmem:[%s284] sm:$0xff] %v744
      %753 = vst [vmem:[%s284 + $0x8] sm:$0xff] %v745
      %754 = vst [vmem:[%s284 + $0x10] sm:$0xff] %v746
      %755 = vst [vmem:[%s284 + $0x18] sm:$0xff] %v747
      %756 = vst [vmem:[%s284 + $0x20] sm:$0xff] %v748
      %757 = vst [vmem:[%s284 + $0x28] sm:$0xff] %v749
      %758 = vst [vmem:[%s284 + $0x30] sm:$0xff] %v750
      %759 = vst [vmem:[%s284 + $0x38] sm:$0xff] %v751
      %v760 = vpack.c.bf16 %v746, %v744
      %v761 = vpack.c.bf16 %v747, %v745
      %v762 = vpack.c.bf16 %v750, %v748
      %v763 = vpack.c.bf16 %v751, %v749
      %v764 = vld [vmem:[%s274] sm:$0xf]
      %v765 = vld [vmem:[%s274 + $0x4] sm:$0xf]
      %v766 = vld [vmem:[%s274 + $0x8] sm:$0xf]
      %v767 = vld [vmem:[%s274 + $0xc] sm:$0xf]
      %v768 = vld [vmem:[%s274 + $0x10] sm:$0xf]
      %v769 = vld [vmem:[%s274 + $0x14] sm:$0xf]
      %v770 = vld [vmem:[%s274 + $0x18] sm:$0xf]
      %v771 = vld [vmem:[%s274 + $0x1c] sm:$0xf]
      %v772 = vld [vmem:[%s274 + $0x20] sm:$0xf]
      %v773 = vld [vmem:[%s274 + $0x24] sm:$0xf]
      %v774 = vld [vmem:[%s274 + $0x28] sm:$0xf]
      %v775 = vld [vmem:[%s274 + $0x2c] sm:$0xf]
      %v776 = vld [vmem:[%s274 + $0x30] sm:$0xf]
      %v777 = vld [vmem:[%s274 + $0x34] sm:$0xf]
      %v778 = vld [vmem:[%s274 + $0x38] sm:$0xf]
      %v779 = vld [vmem:[%s274 + $0x3c] sm:$0xf]
      %v780 = vld [vmem:[%s274 + $0x40] sm:$0xf]
      %v781 = vld [vmem:[%s274 + $0x44] sm:$0xf]
      %v782 = vld [vmem:[%s274 + $0x48] sm:$0xf]
      %v783 = vld [vmem:[%s274 + $0x4c] sm:$0xf]
      %v784 = vld [vmem:[%s274 + $0x50] sm:$0xf]
      %v785 = vld [vmem:[%s274 + $0x54] sm:$0xf]
      %v786 = vld [vmem:[%s274 + $0x58] sm:$0xf]
      %v787 = vld [vmem:[%s274 + $0x5c] sm:$0xf]
      %v788 = vld [vmem:[%s274 + $0x60] sm:$0xf]
      %v789 = vld [vmem:[%s274 + $0x64] sm:$0xf]
      %v790 = vld [vmem:[%s274 + $0x68] sm:$0xf]
      %v791 = vld [vmem:[%s274 + $0x6c] sm:$0xf]
      %v792 = vld [vmem:[%s274 + $0x70] sm:$0xf]
      %v793 = vld [vmem:[%s274 + $0x74] sm:$0xf]
      %v794 = vld [vmem:[%s274 + $0x78] sm:$0xf]
      %v795 = vld [vmem:[%s274 + $0x7c] sm:$0xf]
      %v828 = vunpack.c.l.b16 %v764
      %v829 = vunpack.c.l.b16 %v765
      %v830 = vunpack.c.l.b16 %v766
      %v831 = vunpack.c.l.b16 %v767
      %v832 = vunpack.c.l.b16 %v768
      %v833 = vunpack.c.l.b16 %v769
      %v834 = vunpack.c.l.b16 %v770
      %v835 = vunpack.c.l.b16 %v771
      %v836 = vunpack.c.l.b16 %v772
      %v837 = vunpack.c.l.b16 %v773
      %v838 = vunpack.c.l.b16 %v774
      %v839 = vunpack.c.l.b16 %v775
      %v840 = vunpack.c.l.b16 %v776
      %v841 = vunpack.c.l.b16 %v777
      %v842 = vunpack.c.l.b16 %v778
      %v843 = vunpack.c.l.b16 %v779
      %v844 = vunpack.c.l.b16 %v780
      %v845 = vunpack.c.l.b16 %v781
      %v846 = vunpack.c.l.b16 %v782
      %v847 = vunpack.c.l.b16 %v783
      %v848 = vunpack.c.l.b16 %v784
      %v849 = vunpack.c.l.b16 %v785
      %v850 = vunpack.c.l.b16 %v786
      %v851 = vunpack.c.l.b16 %v787
      %v852 = vunpack.c.l.b16 %v788
      %v853 = vunpack.c.l.b16 %v789
      %v854 = vunpack.c.l.b16 %v790
      %v855 = vunpack.c.l.b16 %v791
      %v856 = vunpack.c.l.b16 %v792
      %v857 = vunpack.c.l.b16 %v793
      %v858 = vunpack.c.l.b16 %v794
      %v859 = vunpack.c.l.b16 %v795
      %v860 = vpack.c.b16 %v829, %v828
      %v861 = vpack.c.b16 %v831, %v830
      %v862 = vpack.c.b16 %v833, %v832
      %v863 = vpack.c.b16 %v835, %v834
      %v864 = vpack.c.b16 %v837, %v836
      %v865 = vpack.c.b16 %v839, %v838
      %v866 = vpack.c.b16 %v841, %v840
      %v867 = vpack.c.b16 %v843, %v842
      %v868 = vpack.c.b16 %v845, %v844
      %v869 = vpack.c.b16 %v847, %v846
      %v870 = vpack.c.b16 %v849, %v848
      %v871 = vpack.c.b16 %v851, %v850
      %v872 = vpack.c.b16 %v853, %v852
      %v873 = vpack.c.b16 %v855, %v854
      %v874 = vpack.c.b16 %v857, %v856
      %v875 = vpack.c.b16 %v859, %v858
      %892 = vmatprep.subr.bf16.mxu0 0
      %893 = vmatpush1.bf16.msra.mxu0 %v860
      %894 = vmatprep.subr.bf16.mxu0 0
      %895 = vmatpush1.bf16.msra.mxu0 %v861
      %896 = vmatprep.subr.bf16.mxu0 0
      %897 = vmatpush1.bf16.msra.mxu0 %v862
      %898 = vmatprep.subr.bf16.mxu0 0
      %899 = vmatpush1.bf16.msra.mxu0 %v863
      %900 = vmatprep.subr.bf16.mxu0 0
      %901 = vmatpush1.bf16.msra.mxu0 %v864
      %902 = vmatprep.subr.bf16.mxu0 0
      %903 = vmatpush1.bf16.msra.mxu0 %v865
      %904 = vmatprep.subr.bf16.mxu0 0
      %905 = vmatpush1.bf16.msra.mxu0 %v866
      %906 = vmatprep.subr.bf16.mxu0 0
      %907 = vmatpush1.bf16.msra.mxu0 %v867
      %908 = vmatprep.subr.bf16.mxu0 0
      %909 = vmatpush1.bf16.msra.mxu0 %v868
      %910 = vmatprep.subr.bf16.mxu0 0
      %911 = vmatpush1.bf16.msra.mxu0 %v869
      %912 = vmatprep.subr.bf16.mxu0 0
      %913 = vmatpush1.bf16.msra.mxu0 %v870
      %914 = vmatprep.subr.bf16.mxu0 0
      %915 = vmatpush1.bf16.msra.mxu0 %v871
      %916 = vmatprep.subr.bf16.mxu0 0
      %917 = vmatpush1.bf16.msra.mxu0 %v872
      %918 = vmatprep.subr.bf16.mxu0 0
      %919 = vmatpush1.bf16.msra.mxu0 %v873
      %920 = vmatprep.subr.bf16.mxu0 0
      %921 = vmatpush1.bf16.msra.mxu0 %v874
      %922 = vmatprep.subr.bf16.mxu0 0
      %923 = vmatpush1.bf16.msra.mxu0 %v875
      %924 = vmatprep.mubr.bf16.mxu0 %v761
      %925 = vmatmul.mubr.bf16.gmra.mrb[0].mxu0 %v760
      %v926 = vpop.f32.mrb[0].mxu0
      %v927 = vadd.f32 0.0, %v926
      %v928 = vpop.f32.mrb[0].mxu0
      %v929 = vpop.f32.mrb[0].mxu0
      %v930 = vadd.f32 0.0, %v929
      %v931 = vpop.f32.mrb[0].mxu0
      %932 = vmatprep.mubr.bf16.mxu0 %v763
      %933 = vmatmul.mubr.bf16.gmra.mrb[0].mxu0 %v762
      %v934 = vpop.f32.mrb[0].mxu0
      %v935 = vadd.f32 0.0, %v934
      %v936 = vpop.f32.mrb[0].mxu0
      %v937 = vpop.f32.mrb[0].mxu0
      %v938 = vadd.f32 0.0, %v937
      %v939 = vpop.f32.mrb[0].mxu0
      %940 = vdwg.mxu0
      %941 = vst [vmem:[%s279] sm:$0xff] %v927
      %942 = vst [vmem:[%s279 + $0x8] sm:$0xff] %v930
      %943 = vst [vmem:[%s279 + $0x10] sm:$0xff] %v935
      %944 = vst [vmem:[%s279 + $0x18] sm:$0xff] %v938
      %p945 = scmp.lt.s32.totalorder %s18, 1
      %s946 = scalar_select %p945, %s18, 1
      %s947 = smul.addr %s946, 4
      %s948 = smul.addr %s947, 8
      %s949 = scalar_lea.vmem %s5, %s948
      %p950 = scmp.lt.s32.totalorder %s18, 1
      %s951 = scalar_select %p950, %s18, 1
      %s952 = smul.addr %s951, 8
      %s953 = smul.addr %s952, 8
      %s954 = scalar_lea.vmem %s6, %s953
      // Predicated region
      $region41: #{attention_forward.1} parent=39 // pred_check
        %p955 = pneg %p151
      $region42: #{attention_forward.1} parent=39 // pred_check_branch
        %957 = sbr.rel (%p955) target = $region44
      $region43: #{attention_forward.1} parent=39 // pred_region
        _
      $region44: #{attention_forward.1} parent=39 // pred_fallthru
        _
      // Predicated region
      $region45: #{attention_forward.1} parent=39 // pred_check
        %p958 = pneg %p177
      $region46: #{attention_forward.1} parent=39 // pred_check_branch
        %960 = sbr.rel (%p958) target = $region48
      $region47: #{attention_forward.1} parent=39 // pred_region
        _
      $region48: #{attention_forward.1} parent=39 // pred_fallthru
        _
    $region40: #{attention_forward.1} parent=5 // pred_fallthru
      _
    %p961 = scmp.le.s32.totalorder 2, %s13
    // Predicated region
    $region49: #{attention_forward.1} parent=5 // pred_check
      %p962 = pneg %p961
    $region50: #{attention_forward.1} parent=5 // pred_check_branch
      %964 = sbr.rel (%p962) target = $region52
    $region51: #{attention_forward.1} parent=5 // pred_region
      %s965 = ssub.s32 %s13, 2
      // Predicated region
      $region53: #{attention_forward.1} parent=51 // pred_check
        %p966 = pneg %p157
      $region54: #{attention_forward.1} parent=51 // pred_check_branch
        %968 = sbr.rel (%p966) target = $region56
      $region55: #{attention_forward.1} parent=51 // pred_region
        %p969 = scmp.lt.s32.totalorder %s19, 1
        %s970 = scalar_select %p969, %s19, 1
        %s971 = smul.addr %s970, 4
        %s972 = smul.addr %s971, 8
        %s973 = scalar_lea.vmem %s5, %s972
      $region56: #{attention_forward.1} parent=51 // pred_fallthru
        _
      // Predicated region
      $region57: #{attention_forward.1} parent=51 // pred_check
        %p974 = pneg %p183
      $region58: #{attention_forward.1} parent=51 // pred_check_branch
        %976 = sbr.rel (%p974) target = $region60
      $region59: #{attention_forward.1} parent=51 // pred_region
        %p977 = scmp.lt.s32.totalorder %s19, 1
        %s978 = scalar_select %p977, %s19, 1
        %s979 = smul.addr %s978, 8
        %s980 = smul.addr %s979, 8
        %s981 = scalar_lea.vmem %s6, %s980
      $region60: #{attention_forward.1} parent=51 // pred_fallthru
        _
    $region52: #{attention_forward.1} parent=5 // pred_fallthru
      _
  $region6: #{attention_forward.1} parent=0 // loop_footer
    %s17 = sadd.s32 1, %s13
  $region7: #{attention_forward.1} parent=0 // loop_footer_branch
    %12 = sbr.rel target = $region3
  $region8: #{attention_forward.1} parent=0 // loop_exit
    _

</llo_original>
